<compile_context>
chip_gen: v7x
topology: tpu7x:2x2x1
jax: 0.10.0
libtpu: 0.0.40
codegen_flags: <defaults>
</compile_context>

<pallas_src>
import jax
import jax.numpy as jnp
from jax import lax
from jax.experimental import pallas as pl
from jax.experimental.pallas import tpu as pltpu

LN_EPS = 1e-5
N_OUT = 6            # true output width
N_OUT_PAD = 8        # padded output lanes (32 B/row f32); wrapper slices [:, :6]
LO, HI = 0.5, 5.5    # sigmoid_range bounds


def _round_up(n, m):
    return (n + m - 1) // m * m


def _sigmoid_approx(x):
    # exp -> EUP, approx reciprocal -> EUP slot; keeps the VALU slots free.
    return pl.reciprocal(1.0 + jnp.exp(-x), approx=True)


def _sigmoid_exact(x):
    # Exact sigmoid for the final range mapping: result is guaranteed in (0, 1],
    # so sigmoid_range stays inside [LO, HI] (approx reciprocal can overshoot).
    return 1.0 / (1.0 + jnp.exp(-x))


def _layer_norm_noaffine(h):
    # One-pass stats: var = E[h^2] - mu^2; the two reductions are independent.
    mu = jnp.mean(h, axis=-1, keepdims=True)
    ms = jnp.mean(h * h, axis=-1, keepdims=True)
    var = jnp.maximum(ms - mu * mu, 0.0)
    return (h - mu) * lax.rsqrt(var + LN_EPS)


def feedback_head_kernel(x_ref, w0_ref, b0_ref, w1_ref, bf_ref, o_ref):
    """One batch tile; weights/biases are VMEM-resident across the grid.

    Note: zero-padded batch rows (see wrapper) hit LN with var=0 -> rsqrt(eps);
    the result is finite (exactly 0 after normalization) and those rows are
    sliced off outside, so this is benign -- do not "fix" it.
    """
    h = x_ref[...].astype(jnp.float32)

    # --- LinLnDrop #0: LN (affine folded into w0/b0) -> Linear -> Swish
    h = _layer_norm_noaffine(h)
    h = jnp.dot(h.astype(jnp.bfloat16), w0_ref[...],
                preferred_element_type=jnp.float32) + b0_ref[...]
    h = h * _sigmoid_approx(h)  # Swish / SiLU

    # --- LinLnDrop #1 + final Linear, folded: LN -> h @ (g1*(w1@wf)) + (b1@(w1@wf)+bf)
    h = _layer_norm_noaffine(h)
    y = jnp.dot(h.astype(jnp.bfloat16), w1_ref[...],
                preferred_element_type=jnp.float32) + bf_ref[...]

    # --- sigmoid_range(y, 0.5, 5.5); 8-lane output -> 32 B/row HBM writeback.
    o_ref[...] = (_sigmoid_exact(y) * (HI - LO) + LO).astype(o_ref.dtype)


def fold_params(params):
    """Exact algebraic folds done once, outside the kernel."""
    g0 = params["g0"].reshape(-1)          # (d0,)
    b0 = params["b0"].reshape(1, -1)       # (1, d0)
    w0 = params["w0"]                      # (d0, d1)
    g1 = params["g1"].reshape(-1)          # (d1,)
    b1 = params["b1"].reshape(1, -1)       # (1, d1)
    w1 = params["w1"]                      # (d1, d2)
    wf = params["wf"]                      # (d2, 6)
    bf = params["bf"].reshape(1, -1)       # (1, 6)

    w1f = w1 @ wf                          # (d1, 6)   fold the two last matmuls
    w0_eff = g0[:, None] * w0              # (d0, d1)  LN0 affine -> w0
    b0_eff = b0 @ w0                       # (1, d1)
    w1_eff = g1[:, None] * w1f             # (d1, 6)   LN1 affine -> (w1@wf)
    b_eff = b1 @ w1f + bf                  # (1, 6)

    pad = N_OUT_PAD - b_eff.shape[-1]      # pad 6 -> 8 output lanes
    w1_eff = jnp.pad(w1_eff, ((0, 0), (0, pad)))
    b_eff = jnp.pad(b_eff, ((0, 0), (0, pad)))

    return (w0_eff.astype(jnp.bfloat16), b0_eff.astype(jnp.float32),
            w1_eff.astype(jnp.bfloat16), b_eff.astype(jnp.float32))


def _choose_batch_tiling(B, tile_b_max):
    """Minimize batch padding; keep >=2 (even) grid steps for large batches so
    the 'parallel' axis feeds both v7x TensorCores."""
    n_tiles = pl.cdiv(B, tile_b_max)
    if B >= 1024:
        n_tiles = max(n_tiles, 2)
    if n_tiles > 1 and n_tiles % 2:
        n_tiles += 1
    tile_b = _round_up(pl.cdiv(B, n_tiles), 8)
    return tile_b, n_tiles


def feedback_head_forward(x, params, *, tile_b_max=4096):
    """x: (B, 1, D0) float32. Returns (B, 6) float32.

    tile_b_max: rows per grid step. 4096 rows at small dims is ~1 MiB of
    double-buffered x + ~0.25 MiB of output -- far under VMEM on all targets;
    lower it if the hidden dims are large, or raise vmem_limit_bytes (<=48 MiB
    on v7x).
    """
    x2d = jnp.squeeze(x, axis=1)           # matches x.squeeze(1)
    B, d0 = x2d.shape
    n_out = params["bf"].shape[-1]

    w0_eff, b0_eff, w1_eff, b_eff = fold_params(params)
    d1 = w0_eff.shape[1]
    n_pad = w1_eff.shape[1]                # = N_OUT_PAD

    tile_b, n_tiles = _choose_batch_tiling(B, tile_b_max)
    Bp = tile_b * n_tiles
    if Bp != B:
        x2d = jnp.pad(x2d, ((0, Bp - B), (0, 0)))
    grid = (n_tiles,)

    flops = 2 * Bp * (d0 * d1 + d1 * n_pad) + 12 * Bp * (d0 + d1 + n_pad)
    transcendentals = Bp * (2 * d1 + 2 * n_pad + 4)
    bytes_accessed = (x2d.size * 4 + w0_eff.size * 2 + b0_eff.size * 4
                      + w1_eff.size * 2 + b_eff.size * 4 + Bp * n_pad * 4)

    out = pl.pallas_call(
        feedback_head_kernel,
        out_shape=jax.ShapeDtypeStruct((Bp, n_pad), jnp.float32),
        grid_spec=pltpu.PrefetchScalarGridSpec(
            num_scalar_prefetch=0,
            grid=grid,
            in_specs=[
                pl.BlockSpec((tile_b, d0), lambda i: (i, 0)),   # x: pipelined tiles
                pl.BlockSpec((d0, d1), lambda i: (0, 0)),       # weights: resident
                pl.BlockSpec((1, d1), lambda i: (0, 0)),
                pl.BlockSpec((d1, n_pad), lambda i: (0, 0)),
                pl.BlockSpec((1, n_pad), lambda i: (0, 0)),
            ],
            out_specs=pl.BlockSpec((tile_b, n_pad), lambda i: (i, 0)),
        ),
        compiler_params=pltpu.CompilerParams(
            dimension_semantics=("parallel",),                  # v7x: 2 TCs split batch
            vmem_limit_bytes=32 * 1024 * 1024,
        ),
        cost_estimate=pl.CostEstimate(
            flops=flops,
            transcendentals=transcendentals,
            bytes_accessed=bytes_accessed,
        ),
    )(x2d, w0_eff, b0_eff, w1_eff, b_eff)

    return out[:B, :n_out]


def init_params(key, dims):
    """dims = [d0, d1, d2]; two LinLnDrop layers + final Linear(d2 -> 6)."""
    d0, d1, d2 = dims
    k0, k1, k2, k3 = jax.random.split(key, 4)
    scale = lambda fan_in: 1.0 / jnp.sqrt(jnp.float32(fan_in))
    return {
        "g0": jnp.ones((1, d0), jnp.float32),
        "b0": jnp.zeros((1, d0), jnp.float32),
        "w0": jax.random.uniform(k0, (d0, d1), jnp.float32, -1.0, 1.0) * scale(d0),
        "g1": jnp.ones((1, d1), jnp.float32),
        "b1": jnp.zeros((1, d1), jnp.float32),
        "w1": jax.random.uniform(k1, (d1, d2), jnp.float32, -1.0, 1.0) * scale(d1),
        "wf": jax.random.uniform(k2, (d2, N_OUT), jnp.float32, -1.0, 1.0) * scale(d2),
        "bf": jax.random.uniform(k3, (1, N_OUT), jnp.float32, -1.0, 1.0) * scale(d2),
    }


def reference_forward(x, params):
    """Pure-JAX unfused reference (matches the PyTorch forward, eval mode)."""
    def ln(h, g, b):
        mu = jnp.mean(h, axis=-1, keepdims=True)
        var = jnp.mean((h - mu) ** 2, axis=-1, keepdims=True)
        return (h - mu) * lax.rsqrt(var + LN_EPS) * g + b

    h = jnp.squeeze(x, axis=1)
    h = ln(h, params["g0"], params["b0"]) @ params["w0"]
    h = h * jax.nn.sigmoid(h)
    h = ln(h, params["g1"], params["b1"]) @ params["w1"]
    y = h @ params["wf"] + params["bf"]
    return jax.nn.sigmoid(y) * (HI - LO) + LO


if __name__ == "__main__":
    key = jax.random.PRNGKey(0)
    k_x, k_x2, k_p = jax.random.split(key, 3)

    dims = [32, 64, 32]          # dims argument of FeedbackHead
    B = 8
    x = jax.random.normal(k_x, (B, 1, dims[0]), jnp.float32)  # (B, 1, D) like PyTorch
    params = init_params(k_p, dims)

    out = jax.block_until_ready(feedback_head_forward(x, params))
    assert out.shape == (B, N_OUT)
    # sigmoid_range(., 0.5, 5.5) keeps outputs within the (closed) range
    assert bool(jnp.all(out >= LO)) and bool(jnp.all(out <= HI))
    # Validate the algebraic folds / bf16 operands against the unfused f32 reference.
    ref = reference_forward(x, params)
    assert bool(jnp.all(jnp.abs(out - ref) < 3e-2)), float(jnp.max(jnp.abs(out - ref)))

    # Also exercise the batch-padding path (B not a multiple of the tile).
    B2 = 13
    x2 = jax.random.normal(k_x2, (B2, 1, dims[0]), jnp.float32)
    out2 = jax.block_until_ready(feedback_head_forward(x2, params))
    ref2 = reference_forward(x2, params)
    assert out2.shape == (B2, N_OUT)
    assert bool(jnp.all(jnp.abs(out2 - ref2) < 3e-2)), float(jnp.max(jnp.abs(out2 - ref2)))

    print("KERNEL_OK")
</pallas_src>

<mosaic_0001>
module attributes {stable_mosaic.version = 11 : i64} {
  func.func @feedback_head_kernel(%arg0: i32, %arg1: memref<8x32xf32, #tpu.memory_space<vmem>>, %arg2: memref<32x64xbf16, #tpu.memory_space<vmem>>, %arg3: memref<1x64xf32, #tpu.memory_space<vmem>>, %arg4: memref<64x8xbf16, #tpu.memory_space<vmem>>, %arg5: memref<1x8xf32, #tpu.memory_space<vmem>>, %arg6: memref<8x8xf32, #tpu.memory_space<vmem>>) attributes {dimension_semantics = [#tpu.dimension_semantics<parallel>], iteration_bounds = array<i64: 1>, scalar_prefetch = 0 : i64, scratch_operands = 0 : i64, tpu.core_type = #tpu.core_type<tc>, window_params = [{transform_indices = @transform_0, window_bounds = array<i64: 8, 32>}, {pipeline_mode = #tpu.pipeline_mode<synchronous>, transform_indices = @transform_1, window_bounds = array<i64: 32, 64>}, {pipeline_mode = #tpu.pipeline_mode<synchronous>, transform_indices = @transform_2, window_bounds = array<i64: 1, 64>}, {pipeline_mode = #tpu.pipeline_mode<synchronous>, transform_indices = @transform_3, window_bounds = array<i64: 64, 8>}, {pipeline_mode = #tpu.pipeline_mode<synchronous>, transform_indices = @transform_4, window_bounds = array<i64: 1, 8>}, {transform_indices = @transform_5, window_bounds = array<i64: 8, 8>}]} {
    %c0 = arith.constant 0 : index
    %c0_0 = arith.constant 0 : index
    %0 = vector.load %arg1[%c0, %c0_0] : memref<8x32xf32, #tpu.memory_space<vmem>>, vector<8x32xf32>
    %cst = arith.constant dense<0.000000e+00> : vector<8xf32>
    %1 = vector.multi_reduction <add>, %0, %cst [1] : vector<8x32xf32> to vector<8xf32>
    %2 = vector.shape_cast %1 : vector<8xf32> to vector<8x1xf32>
    %cst_1 = arith.constant 3.200000e+01 : f32
    %3 = vector.broadcast %cst_1 : f32 to vector<8x1xf32>
    %4 = arith.divf %2, %3 : vector<8x1xf32>
    %5 = arith.mulf %0, %0 : vector<8x32xf32>
    %cst_2 = arith.constant dense<0.000000e+00> : vector<8xf32>
    %6 = vector.multi_reduction <add>, %5, %cst_2 [1] : vector<8x32xf32> to vector<8xf32>
    %7 = vector.shape_cast %6 : vector<8xf32> to vector<8x1xf32>
    %cst_3 = arith.constant 3.200000e+01 : f32
    %8 = vector.broadcast %cst_3 : f32 to vector<8x1xf32>
    %9 = arith.divf %7, %8 : vector<8x1xf32>
    %10 = arith.mulf %4, %4 : vector<8x1xf32>
    %11 = arith.subf %9, %10 : vector<8x1xf32>
    %cst_4 = arith.constant 0.000000e+00 : f32
    %12 = vector.broadcast %cst_4 : f32 to vector<8x1xf32>
    %13 = arith.maximumf %11, %12 : vector<8x1xf32>
    %14 = vector.broadcast %4 : vector<8x1xf32> to vector<8x32xf32>
    %15 = arith.subf %0, %14 : vector<8x32xf32>
    %cst_5 = arith.constant 9.99999974E-6 : f32
    %16 = vector.broadcast %cst_5 : f32 to vector<8x1xf32>
    %17 = arith.addf %13, %16 : vector<8x1xf32>
    %18 = math.rsqrt %17 : vector<8x1xf32>
    %19 = vector.broadcast %18 : vector<8x1xf32> to vector<8x32xf32>
    %20 = arith.mulf %15, %19 : vector<8x32xf32>
    %21 = arith.truncf %20 : vector<8x32xf32> to vector<8x32xbf16>
    %c0_6 = arith.constant 0 : index
    %c0_7 = arith.constant 0 : index
    %22 = vector.load %arg2[%c0_6, %c0_7] : memref<32x64xbf16, #tpu.memory_space<vmem>>, vector<32x64xbf16>
    %cst_8 = arith.constant dense<0.000000e+00> : vector<8x64xf32>
    %23 = tpu.matmul %21, %22, %cst_8 {dimension_numbers = #tpu.dot_dimension_numbers<[1], [0], [0], [1], [0, 0, 1, 1], [], []>} : vector<8x32xbf16>, vector<32x64xbf16>, vector<8x64xf32> -> vector<8x64xf32>
    %c0_9 = arith.constant 0 : index
    %c0_10 = arith.constant 0 : index
    %24 = vector.load %arg3[%c0_9, %c0_10] : memref<1x64xf32, #tpu.memory_space<vmem>>, vector<1x64xf32>
    %25 = vector.broadcast %24 : vector<1x64xf32> to vector<8x64xf32>
    %26 = arith.addf %23, %25 : vector<8x64xf32>
    %cst_11 = arith.constant 0.000000e+00 : f32
    %27 = vector.broadcast %cst_11 : f32 to vector<8x64xf32>
    %28 = arith.subf %27, %26 : vector<8x64xf32>
    %29 = math.exp %28 : vector<8x64xf32>
    %cst_12 = arith.constant 1.000000e+00 : f32
    %30 = vector.broadcast %cst_12 : f32 to vector<8x64xf32>
    %31 = arith.addf %30, %29 : vector<8x64xf32>
    %32 = tpu.reciprocal %31 {approx = true} : vector<8x64xf32> -> vector<8x64xf32>
    %33 = arith.mulf %26, %32 : vector<8x64xf32>
    %cst_13 = arith.constant dense<0.000000e+00> : vector<8xf32>
    %34 = vector.multi_reduction <add>, %33, %cst_13 [1] : vector<8x64xf32> to vector<8xf32>
    %35 = vector.shape_cast %34 : vector<8xf32> to vector<8x1xf32>
    %cst_14 = arith.constant 6.400000e+01 : f32
    %36 = vector.broadcast %cst_14 : f32 to vector<8x1xf32>
    %37 = arith.divf %35, %36 : vector<8x1xf32>
    %38 = arith.mulf %33, %33 : vector<8x64xf32>
    %cst_15 = arith.constant dense<0.000000e+00> : vector<8xf32>
    %39 = vector.multi_reduction <add>, %38, %cst_15 [1] : vector<8x64xf32> to vector<8xf32>
    %40 = vector.shape_cast %39 : vector<8xf32> to vector<8x1xf32>
    %cst_16 = arith.constant 6.400000e+01 : f32
    %41 = vector.broadcast %cst_16 : f32 to vector<8x1xf32>
    %42 = arith.divf %40, %41 : vector<8x1xf32>
    %43 = arith.mulf %37, %37 : vector<8x1xf32>
    %44 = arith.subf %42, %43 : vector<8x1xf32>
    %cst_17 = arith.constant 0.000000e+00 : f32
    %45 = vector.broadcast %cst_17 : f32 to vector<8x1xf32>
    %46 = arith.maximumf %44, %45 : vector<8x1xf32>
    %47 = vector.broadcast %37 : vector<8x1xf32> to vector<8x64xf32>
    %48 = arith.subf %33, %47 : vector<8x64xf32>
    %cst_18 = arith.constant 9.99999974E-6 : f32
    %49 = vector.broadcast %cst_18 : f32 to vector<8x1xf32>
    %50 = arith.addf %46, %49 : vector<8x1xf32>
    %51 = math.rsqrt %50 : vector<8x1xf32>
    %52 = vector.broadcast %51 : vector<8x1xf32> to vector<8x64xf32>
    %53 = arith.mulf %48, %52 : vector<8x64xf32>
    %54 = arith.truncf %53 : vector<8x64xf32> to vector<8x64xbf16>
    %c0_19 = arith.constant 0 : index
    %c0_20 = arith.constant 0 : index
    %55 = vector.load %arg4[%c0_19, %c0_20] : memref<64x8xbf16, #tpu.memory_space<vmem>>, vector<64x8xbf16>
    %cst_21 = arith.constant dense<0.000000e+00> : vector<8x8xf32>
    %56 = tpu.matmul %54, %55, %cst_21 {dimension_numbers = #tpu.dot_dimension_numbers<[1], [0], [0], [1], [0, 0, 1, 1], [], []>} : vector<8x64xbf16>, vector<64x8xbf16>, vector<8x8xf32> -> vector<8x8xf32>
    %c0_22 = arith.constant 0 : index
    %c0_23 = arith.constant 0 : index
    %57 = vector.load %arg5[%c0_22, %c0_23] : memref<1x8xf32, #tpu.memory_space<vmem>>, vector<1x8xf32>
    %58 = vector.broadcast %57 : vector<1x8xf32> to vector<8x8xf32>
    %59 = arith.addf %56, %58 : vector<8x8xf32>
    %cst_24 = arith.constant 0.000000e+00 : f32
    %60 = vector.broadcast %cst_24 : f32 to vector<8x8xf32>
    %61 = arith.subf %60, %59 : vector<8x8xf32>
    %62 = math.exp %61 : vector<8x8xf32>
    %cst_25 = arith.constant 1.000000e+00 : f32
    %63 = vector.broadcast %cst_25 : f32 to vector<8x8xf32>
    %64 = arith.addf %63, %62 : vector<8x8xf32>
    %cst_26 = arith.constant 1.000000e+00 : f32
    %65 = vector.broadcast %cst_26 : f32 to vector<8x8xf32>
    %66 = arith.divf %65, %64 : vector<8x8xf32>
    %cst_27 = arith.constant 5.000000e+00 : f32
    %67 = vector.broadcast %cst_27 : f32 to vector<8x8xf32>
    %68 = arith.mulf %66, %67 : vector<8x8xf32>
    %cst_28 = arith.constant 5.000000e-01 : f32
    %69 = vector.broadcast %cst_28 : f32 to vector<8x8xf32>
    %70 = arith.addf %68, %69 : vector<8x8xf32>
    %c0_29 = arith.constant 0 : index
    %c0_30 = arith.constant 0 : index
    %71 = vector.load %arg6[%c0_29, %c0_30] : memref<8x8xf32, #tpu.memory_space<vmem>>, vector<8x8xf32>
    tpu.vector_store %arg6[%c0_29, %c0_30], %70 {strides = array<i32>} : memref<8x8xf32, #tpu.memory_space<vmem>>, vector<8x8xf32>,
    return
  }
  func.func @transform_0(%arg0: i32) -> (i32, i32) {
    %c0_i32 = arith.constant 0 : i32
    %c0_i32_0 = arith.constant 0 : i32
    return %arg0, %c0_i32 : i32, i32
  }
  func.func @transform_1(%arg0: i32) -> (i32, i32) {
    %c0_i32 = arith.constant 0 : i32
    %c0_i32_0 = arith.constant 0 : i32
    %c0_i32_1 = arith.constant 0 : i32
    return %c0_i32, %c0_i32_0 : i32, i32
  }
  func.func @transform_2(%arg0: i32) -> (i32, i32) {
    %c0_i32 = arith.constant 0 : i32
    %c0_i32_0 = arith.constant 0 : i32
    %c0_i32_1 = arith.constant 0 : i32
    return %c0_i32, %c0_i32_0 : i32, i32
  }
  func.func @transform_3(%arg0: i32) -> (i32, i32) {
    %c0_i32 = arith.constant 0 : i32
    %c0_i32_0 = arith.constant 0 : i32
    %c0_i32_1 = arith.constant 0 : i32
    return %c0_i32, %c0_i32_0 : i32, i32
  }
  func.func @transform_4(%arg0: i32) -> (i32, i32) {
    %c0_i32 = arith.constant 0 : i32
    %c0_i32_0 = arith.constant 0 : i32
    %c0_i32_1 = arith.constant 0 : i32
    return %c0_i32, %c0_i32_0 : i32, i32
  }
  func.func @transform_5(%arg0: i32) -> (i32, i32) {
    %c0_i32 = arith.constant 0 : i32
    %c0_i32_0 = arith.constant 0 : i32
    return %arg0, %c0_i32 : i32, i32
  }
}

</mosaic_0001>

<llo_original>
// kernel: tpu_custom_call.1
$region0: #{tpu_custom_call.1}
  #allocation0 [shape = 'u32[]', space=smem, size = 0x4, offset = 0x4, fixed_abs, tag = 'smem constant byte address 0x4 - core index']
  #allocation1 [shape = 'u32[144,128]{1,0:T(1,128)}', space=vmem, size = 0x12000, scoped, tag = 'internal scratch']
  %s0 = inlined_call_operand.vmem [shape: f32[8,32], index: 0, kind: input, shape index: {}]
  %s1 = inlined_call_operand.vmem [shape: bf16[32,64], index: 1, kind: input, shape index: {}]
  %s2 = inlined_call_operand.vmem [shape: f32[1,64], index: 2, kind: input, shape index: {}]
  %s3 = inlined_call_operand.vmem [shape: bf16[64,8], index: 3, kind: input, shape index: {}]
  %s4 = inlined_call_operand.vmem [shape: f32[1,8], index: 4, kind: input, shape index: {}]
  %s5 = inlined_call_operand.hbm [shape: f32[8,8], index: 5, kind: output, shape index: {}]
  %s6 = sld [smem:[#allocation0]]
  $region30: #{tpu_custom_call.1} parent=0
    _
  %s8 = ssub.s32 1, %s6
  %s9 = scalar_select 0, %s8, %s6
  $region1: #{tpu_custom_call.1} parent=0
    #allocation2 [shape = 'u8[4096]{0}', space=vmem, size = 0x1000, scoped, tag = 'output window, operand 0, single buffered']
    #allocation3 [shape = 's32[1]{0}', space=sflag, size = 0x4, scoped, tag = 'scoped memory for tpu_custom_call.1']
    %10 = vsyncpa [#allocation3], 0
    // Predicated region
    $region2: #{tpu_custom_call.1} parent=1 // pred_check
      _
    $region3: #{tpu_custom_call.1} parent=1 // pred_check_branch
      %12 = sbr.rel (0) target = $region5
    $region4: #{tpu_custom_call.1} parent=1 // pred_region
      _
    $region5: #{tpu_custom_call.1} parent=1 // pred_fallthru
      _
    // Predicated region
    $region6: #{tpu_custom_call.1} parent=1 // pred_check
      _
    $region7: #{tpu_custom_call.1} parent=1 // pred_check_branch
      %14 = sbr.rel (0) target = $region9
    $region8: #{tpu_custom_call.1} parent=1 // pred_region
      _
    $region9: #{tpu_custom_call.1} parent=1 // pred_fallthru
      _
    // Predicated region
    $region10: #{tpu_custom_call.1} parent=1 // pred_check
      _
    $region11: #{tpu_custom_call.1} parent=1 // pred_check_branch
      %16 = sbr.rel (0) target = $region13
    $region12: #{tpu_custom_call.1} parent=1 // pred_region
      _
    $region13: #{tpu_custom_call.1} parent=1 // pred_fallthru
      _
    // Predicated region
    $region14: #{tpu_custom_call.1} parent=1 // pred_check
      _
    $region15: #{tpu_custom_call.1} parent=1 // pred_check_branch
      %18 = sbr.rel (0) target = $region17
    $region16: #{tpu_custom_call.1} parent=1 // pred_region
      _
    $region17: #{tpu_custom_call.1} parent=1 // pred_fallthru
      _
    // Predicated region
    $region18: #{tpu_custom_call.1} parent=1 // pred_check
      _
    $region19: #{tpu_custom_call.1} parent=1 // pred_check_branch
      %20 = sbr.rel (0) target = $region21
    $region20: #{tpu_custom_call.1} parent=1 // pred_region
      _
    $region21: #{tpu_custom_call.1} parent=1 // pred_fallthru
      _
    %v22 = vld [vmem:[%s0] sm:$0xff]
    %vm23 = vcmask 261120
    %v24 = vsel %vm23, %v22, 0.0
    %25 = vadd.xlane.f32.xlu0 %v24
    %v26 = vpop.xlane.xlu0 %25
    %v27 = vrcp.pop 32.0
    %v28 = vmul.f32 %v26, %v27
    %v29 = vmul.f32 %v22, %v22
    %v30 = vsel %vm23, %v29, 0.0
    %31 = vadd.xlane.f32.xlu0 %v30
    %v32 = vpop.xlane.xlu0 %31
    %v33 = vmul.f32 %v32, %v27
    %v34 = vmul.f32 %v28, %v28
    %v35 = vsub.f32 %v33, %v34
    %v36 = vmax.f32 %v35, 0.0
    %v37 = vsub.f32 %v22, %v28
    %v38 = vadd.f32 %v36, 1e-05
    %v39 = vrsqrt.pop %v38
    %v40 = vmul.f32 %v37, %v39
    %v41 = vpack.c.bf16 %v40, %v40
    %v42 = vld [vmem:[%s1] sm:$0xf]
    %v43 = vld [vmem:[%s1 + $0x4] sm:$0xf]
    %v44 = vld [vmem:[%s1 + $0x8] sm:$0xf]
    %v45 = vld [vmem:[%s1 + $0xc] sm:$0xf]
    %v46 = vld [vmem:[%s2] sm:$0x1]
    %v48 = vlaneseq
    %v49 = vshrl.u32 %v48, 7
    %v50 = vsub.s32 0, %v49
    %v51 = vrot.slane %v46, %v50
    %v57 = vunpack.c.l.b16 %v42
    %v58 = vunpack.c.l.b16 %v43
    %v59 = vunpack.c.l.b16 %v44
    %v60 = vunpack.c.l.b16 %v45
    %v61 = vpack.c.b16 %v58, %v57
    %v62 = vpack.c.b16 %v60, %v59
    %v66 = vsel %vm23, %v41, 0
    %68 = vmatprep.subr.bf16.mxu0 0
    %69 = vmatpush1.bf16.msra.mxu0 %v61
    %70 = vmatprep.subr.bf16.mxu0 0
    %71 = vmatpush1.bf16.msra.mxu0 %v62
    %72 = vmatprep.subr.bf16.mxu0 0
    %73 = vmatpush1.bf16.msra.mxu0 0
    %74 = vmatprep.subr.bf16.mxu0 0
    %75 = vmatpush1.bf16.msra.mxu0 0
    %76 = vmatprep.subr.bf16.mxu0 0
    %77 = vmatpush1.bf16.msra.mxu0 0
    %78 = vmatprep.subr.bf16.mxu0 0
    %79 = vmatpush1.bf16.msra.mxu0 0
    %80 = vmatprep.subr.bf16.mxu0 0
    %81 = vmatpush1.bf16.msra.mxu0 0
    %82 = vmatprep.subr.bf16.mxu0 0
    %83 = vmatpush1.bf16.msra.mxu0 0
    %84 = vmatprep.subr.bf16.mxu0 0
    %85 = vmatpush1.bf16.msra.mxu0 0
    %86 = vmatprep.subr.bf16.mxu0 0
    %87 = vmatpush1.bf16.msra.mxu0 0
    %88 = vmatprep.subr.bf16.mxu0 0
    %89 = vmatpush1.bf16.msra.mxu0 0
    %90 = vmatprep.subr.bf16.mxu0 0
    %91 = vmatpush1.bf16.msra.mxu0 0
    %92 = vmatprep.subr.bf16.mxu0 0
    %93 = vmatpush1.bf16.msra.mxu0 0
    %94 = vmatprep.subr.bf16.mxu0 0
    %95 = vmatpush1.bf16.msra.mxu0 0
    %96 = vmatprep.subr.bf16.mxu0 0
    %97 = vmatpush1.bf16.msra.mxu0 0
    %98 = vmatprep.subr.bf16.mxu0 0
    %99 = vmatpush1.bf16.msra.mxu0 0
    %100 = vmatprep.mubr.bf16.mxu0 0
    %101 = vmatmul.mubr.bf16.gmra.mrb[0].mxu0 %v66
    %v102 = vpop.f32.mrb[0].mxu0
    %v103 = vadd.f32 %v51, %v102
    %v104 = vpop.f32.mrb[0].mxu0
    %v105 = vpop.f32.mrb[0].mxu0
    %v106 = vpop.f32.mrb[0].mxu0
    %107 = vdwg.mxu0
    %v108 = vsub.f32 0.0, %v103
    %v109 = vmul.f32 %v108, 1.442695
    %v110 = vpow.pop %v109
    %v111 = vadd.f32 %v110, 1.0
    %v112 = vrcp.pop %v111
    %v113 = vmul.f32 %v103, %v112
    %vm114 = vcmask 523264
    %v115 = vsel %vm114, %v113, 0.0
    %116 = vadd.xlane.f32.xlu0 %v115
    %v117 = vpop.xlane.xlu0 %116
    %v118 = vrcp.pop 64.0
    %v119 = vmul.f32 %v117, %v118
    %v120 = vmul.f32 %v113, %v113
    %v121 = vsel %vm114, %v120, 0.0
    %122 = vadd.xlane.f32.xlu0 %v121
    %v123 = vpop.xlane.xlu0 %122
    %v124 = vmul.f32 %v123, %v118
    %v125 = vmul.f32 %v119, %v119
    %v126 = vsub.f32 %v124, %v125
    %v127 = vmax.f32 %v126, 0.0
    %v128 = vsub.f32 %v113, %v119
    %v129 = vadd.f32 %v127, 1e-05
    %v130 = vrsqrt.pop %v129
    %v131 = vmul.f32 %v128, %v130
    %v132 = vpack.c.bf16 %v131, %v131
    %v133 = vld [vmem:[%s3] sm:$0xf]
    %v134 = vld [vmem:[%s3 + $0x4] sm:$0xf]
    %v135 = vld [vmem:[%s3 + $0x8] sm:$0xf]
    %v136 = vld [vmem:[%s3 + $0xc] sm:$0xf]
    %v137 = vld [vmem:[%s3 + $0x10] sm:$0xf]
    %v138 = vld [vmem:[%s3 + $0x14] sm:$0xf]
    %v139 = vld [vmem:[%s3 + $0x18] sm:$0xf]
    %v140 = vld [vmem:[%s3 + $0x1c] sm:$0xf]
    %v141 = vld [vmem:[%s4] sm:$0x1]
    %v143 = vlaneseq
    %v144 = vshrl.u32 %v143, 7
    %v145 = vsub.s32 0, %v144
    %v146 = vrot.slane %v141, %v145
    %v156 = vunpack.c.l.b16 %v133
    %v157 = vunpack.c.l.b16 %v134
    %v158 = vunpack.c.l.b16 %v135
    %v159 = vunpack.c.l.b16 %v136
    %v160 = vunpack.c.l.b16 %v137
    %v161 = vunpack.c.l.b16 %v138
    %v162 = vunpack.c.l.b16 %v139
    %v163 = vunpack.c.l.b16 %v140
    %v164 = vpack.c.b16 %v157, %v156
    %v165 = vpack.c.b16 %v159, %v158
    %v166 = vpack.c.b16 %v161, %v160
    %v167 = vpack.c.b16 %v163, %v162
    %v173 = vsel %vm114, %v132, 0
    %175 = vmatprep.subr.bf16.mxu0 0
    %176 = vmatpush1.bf16.msra.mxu0 %v164
    %177 = vmatprep.subr.bf16.mxu0 0
    %178 = vmatpush1.bf16.msra.mxu0 %v165
    %179 = vmatprep.subr.bf16.mxu0 0
    %180 = vmatpush1.bf16.msra.mxu0 %v166
    %181 = vmatprep.subr.bf16.mxu0 0
    %182 = vmatpush1.bf16.msra.mxu0 %v167
    %183 = vmatprep.subr.bf16.mxu0 0
    %184 = vmatpush1.bf16.msra.mxu0 0
    %185 = vmatprep.subr.bf16.mxu0 0
    %186 = vmatpush1.bf16.msra.mxu0 0
    %187 = vmatprep.subr.bf16.mxu0 0
    %188 = vmatpush1.bf16.msra.mxu0 0
    %189 = vmatprep.subr.bf16.mxu0 0
    %190 = vmatpush1.bf16.msra.mxu0 0
    %191 = vmatprep.subr.bf16.mxu0 0
    %192 = vmatpush1.bf16.msra.mxu0 0
    %193 = vmatprep.subr.bf16.mxu0 0
    %194 = vmatpush1.bf16.msra.mxu0 0
    %195 = vmatprep.subr.bf16.mxu0 0
    %196 = vmatpush1.bf16.msra.mxu0 0
    %197 = vmatprep.subr.bf16.mxu0 0
    %198 = vmatpush1.bf16.msra.mxu0 0
    %199 = vmatprep.subr.bf16.mxu0 0
    %200 = vmatpush1.bf16.msra.mxu0 0
    %201 = vmatprep.subr.bf16.mxu0 0
    %202 = vmatpush1.bf16.msra.mxu0 0
    %203 = vmatprep.subr.bf16.mxu0 0
    %204 = vmatpush1.bf16.msra.mxu0 0
    %205 = vmatprep.subr.bf16.mxu0 0
    %206 = vmatpush1.bf16.msra.mxu0 0
    %207 = vmatprep.mubr.bf16.mxu0 0
    %208 = vmatmul.mubr.bf16.gmra.mrb[0].mxu0 %v173
    %v209 = vpop.f32.mrb[0].mxu0
    %v210 = vadd.f32 %v146, %v209
    %v211 = vpop.f32.mrb[0].mxu0
    %v212 = vpop.f32.mrb[0].mxu0
    %v213 = vpop.f32.mrb[0].mxu0
    %214 = vdwg.mxu0
    %v215 = vsub.f32 0.0, %v210
    %v216 = vmul.f32 %v215, 1.442695
    %v217 = vpow.pop %v216
    %v218 = vadd.f32 %v217, 1.0
    %v219 = vrcp.pop %v218
    %v220 = vmul.f32 1.0, %v219
    %v221 = vmul.f32 %v220, 5.0
    %v222 = vadd.f32 %v221, 0.5
    %vm223 = vcmask 64512
    %224 = vst.msk [vmem:[#allocation2] sm:$0xff] %vm223, %v222
    // Predicated region
    $region22: #{tpu_custom_call.1} parent=1 // pred_check
      _
    $region23: #{tpu_custom_call.1} parent=1 // pred_check_branch
      %226 = sbr.rel (0) target = $region25
    $region24: #{tpu_custom_call.1} parent=1 // pred_region
      %s228 = ssub.s32 128, 128
      %229 = vsyncadd [#allocation3], %s228
      %s231 = sshll.u32 [#allocation2], 4
      %s232 = int_to_ptr.vmem [resolvable:$true] %s231
      %234 = dma.vmem_to_hbm [thread:$0]  %s232, 128, %s5, [#allocation3]
    $region25: #{tpu_custom_call.1} parent=1 // pred_fallthru
      _
    // Predicated region
    $region26: #{tpu_custom_call.1} parent=1 // pred_check
      _
    $region27: #{tpu_custom_call.1} parent=1 // pred_check_branch
      %236 = sbr.rel (0) target = $region29
    $region28: #{tpu_custom_call.1} parent=1 // pred_region
      %237 = dma.done [#allocation3], 128
    $region29: #{tpu_custom_call.1} parent=1 // pred_fallthru
      _
    %238 = vsyncpa [#allocation3], 1

</llo_original>
